<compile_context>
chip_gen: v7x
topology: tpu7x:2x2x1
jax: 0.10.0
libtpu: 0.0.40
codegen_flags: <defaults>
</compile_context>

<pallas_src>
import math
import functools

import jax
import jax.numpy as jnp
from jax.experimental import pallas as pl
from jax.experimental.pallas import tpu as pltpu

_INV_SQRT2 = 1.0 / math.sqrt(2.0)


def _round_up(x, m):
    return pl.cdiv(x, m) * m


def _bert_intermediate_kernel(x_ref, w_ref, b_ref, o_ref, *, use_tanh_gelu):
    # x_ref: (tm, K) token tile; w_ref: (K, tn) weight tile; b_ref: (1, tn) f32 bias.
    h = jnp.dot(x_ref[...], w_ref[...], preferred_element_type=jnp.float32)
    h = h + b_ref[...]                                 # bias pre-cast to f32 in wrapper
    if use_tanh_gelu:
        # tanh approximation: native EUP transcendental (perf option, off by default).
        g = jax.nn.gelu(h, approximate=True)
    else:
        # Exact erf gelu, matching the PyTorch module. NOTE: erf lowers to a VALU
        # polynomial (not a native EUP op); constants are folded to 1 mul + 1 add.
        g = (0.5 * h) * (1.0 + jax.lax.erf(h * _INV_SQRT2))
    o_ref[...] = g.astype(o_ref.dtype)


@functools.partial(
    jax.jit,
    static_argnames=("tm", "tn", "compute_dtype", "out_dtype", "use_tanh_gelu",
                     "vmem_limit_bytes", "weight_vmem_budget_bytes"))
def bert_intermediate(hidden_states, weight_t, bias, *, tm=512, tn=None,
                      compute_dtype=None, out_dtype=None, use_tanh_gelu=False,
                      vmem_limit_bytes=48 * 1024 * 1024,
                      weight_vmem_budget_bytes=16 * 1024 * 1024):
    """BERT intermediate layer: gelu(hidden_states @ weight_t + bias).

    hidden_states: [B, S, H]; weight_t: [H, I] (transposed nn.Linear weight); bias: [I].
    compute_dtype: optional dtype (e.g. jnp.bfloat16) for the matmul operands;
                   accumulation / bias / gelu stay f32.
    out_dtype:     optional output dtype (defaults to hidden_states.dtype).
    tn=None:       auto -> full-N VMEM-resident weight if it fits the budget,
                   otherwise a tiled-N fallback.
    """
    B, S, H = hidden_states.shape
    K, N = weight_t.shape
    assert K == H, f"weight_t must be [hidden, intermediate]; got K={K} vs H={H}"
    assert bias.shape == (N,)
    M = B * S

    out_dtype = hidden_states.dtype if out_dtype is None else out_dtype

    x2d = hidden_states.reshape(M, H)
    w2d = weight_t
    if compute_dtype is not None:
        x2d = x2d.astype(compute_dtype)
        w2d = w2d.astype(compute_dtype)
    assert x2d.dtype == w2d.dtype, (
        f"activation/weight dtype mismatch ({x2d.dtype} vs {w2d.dtype}); a silent "
        "promotion would drop the fast MXU path -- pass compute_dtype= to align them")

    itemsize = jnp.dtype(x2d.dtype).itemsize
    out_item = jnp.dtype(out_dtype).itemsize
    sub = 16 if itemsize < 4 else 8            # sublane granularity for the matmul dtype

    # --- M (token) tiling: large tiles by default, clamped for tiny problems. ---
    tm = max(sub, min(_round_up(tm, sub), _round_up(M, sub)))
    Mp = _round_up(M, tm)

    # --- N (intermediate) tiling: keep the whole weight VMEM-resident when it fits.
    N128 = _round_up(N, 128)
    if tn is None:
        tn = N128 if (K * N128 * itemsize) <= weight_vmem_budget_bytes else 1024
    tn = _round_up(tn, 128)
    weight_resident = tn >= N128
    if weight_resident:
        tn = N128
        Np = N128
    else:
        Np = _round_up(N, tn)

    if Mp != M:
        x2d = jnp.pad(x2d, ((0, Mp - M), (0, 0)))
    b2d = bias.reshape(1, N).astype(jnp.float32)
    if Np != N:
        w2d = jnp.pad(w2d, ((0, 0), (0, Np - N)))
        b2d = jnp.pad(b2d, ((0, 0), (0, Np - N)))

    kernel = functools.partial(_bert_intermediate_kernel, use_tanh_gelu=use_tanh_gelu)

    if weight_resident:
        # 1-D grid over token tiles. Weight/bias block index is grid-invariant, so
        # Pallas DMAs the K x Np weight from HBM exactly once and it stays in VMEM.
        grid = (Mp // tm,)
        in_specs = [
            pl.BlockSpec((tm, K), lambda i: (i, 0)),    # token tile (streamed)
            pl.BlockSpec((K, Np), lambda i: (0, 0)),    # full weight (resident)
            pl.BlockSpec((1, Np), lambda i: (0, 0)),    # f32 bias   (resident)
        ]
        out_specs = pl.BlockSpec((tm, Np), lambda i: (i, 0))
        dim_sem = ("parallel",)
        bytes_accessed = (Mp * K + K * Np) * itemsize + Mp * Np * out_item + Np * 4
    else:
        # Fallback when the weight cannot be VMEM-resident (e.g. f32 BERT-large on
        # v7x): N axis OUTER, M axis INNER, so each (K, tn) weight tile stays
        # resident across the whole inner M sweep and only activations re-stream.
        grid = (Np // tn, Mp // tm)
        in_specs = [
            pl.BlockSpec((tm, K), lambda j, i: (i, 0)),
            pl.BlockSpec((K, tn), lambda j, i: (0, j)),
            pl.BlockSpec((1, tn), lambda j, i: (0, j)),
        ]
        out_specs = pl.BlockSpec((tm, tn), lambda j, i: (i, j))
        dim_sem = ("parallel", "parallel")
        bytes_accessed = ((Np // tn) * Mp * K + K * Np) * itemsize \
                         + Mp * Np * out_item + Np * 4

    cost = pl.CostEstimate(
        flops=2 * M * K * N,
        transcendentals=M * N,
        bytes_accessed=int(bytes_accessed),
    )

    out2d = pl.pallas_call(
        kernel,
        out_shape=jax.ShapeDtypeStruct((Mp, Np), out_dtype),
        grid_spec=pltpu.PrefetchScalarGridSpec(
            num_scalar_prefetch=0,
            grid=grid,
            in_specs=in_specs,
            out_specs=out_specs,
        ),
        compiler_params=pltpu.CompilerParams(
            dimension_semantics=dim_sem,
            vmem_limit_bytes=vmem_limit_bytes,
        ),
        cost_estimate=cost,
    )(x2d, w2d, b2d)

    return out2d[:M, :N].reshape(B, S, N)


def _reference(hidden_states, weight_t, bias):
    h = jnp.einsum("bsh,hi->bsi", hidden_states.astype(jnp.float32),
                   weight_t.astype(jnp.float32)) + bias.astype(jnp.float32)
    return (h * 0.5 * (1.0 + jax.lax.erf(h / math.sqrt(2.0)))).astype(hidden_states.dtype)


if __name__ == "__main__":
    # config.hidden_size = 32, config.intermediate_size = 128, hidden_act = "gelu"
    B, S, H, I = 2, 8, 32, 128

    key = jax.random.PRNGKey(0)
    kx, kw, kb, kw2, kb2 = jax.random.split(key, 5)

    hidden_states = jax.random.normal(kx, (B, S, H), dtype=jnp.float32)
    # nn.Linear weight is [out, in] = [I, H]; the kernel takes its transpose [H, I].
    weight = jax.random.normal(kw, (I, H), dtype=jnp.float32) * (1.0 / math.sqrt(H))
    bias = jax.random.normal(kb, (I,), dtype=jnp.float32) * 0.02
    weight_t = weight.T

    ref = _reference(hidden_states, weight_t, bias)

    # 1) Default path: VMEM-resident weight, 1-D grid over M, exact f32 erf gelu.
    out = jax.block_until_ready(bert_intermediate(hidden_states, weight_t, bias))
    assert out.shape == (B, S, I)
    assert jnp.allclose(out, ref, atol=1e-5, rtol=1e-5)

    # 2) Row padding (M = 10 -> padded to a sublane multiple).
    hs_odd = hidden_states[:, :5, :]
    out_pad = jax.block_until_ready(bert_intermediate(hs_odd, weight_t, bias))
    assert jnp.allclose(out_pad, _reference(hs_odd, weight_t, bias), atol=1e-5, rtol=1e-5)

    # 3) Tiled-N fallback path (2-D grid, N outer / M inner) with a wider intermediate.
    I2 = 256
    weight2 = jax.random.normal(kw2, (I2, H), dtype=jnp.float32) * (1.0 / math.sqrt(H))
    bias2 = jax.random.normal(kb2, (I2,), dtype=jnp.float32) * 0.02
    weight2_t = weight2.T
    out_tiled = jax.block_until_ready(
        bert_intermediate(hidden_states, weight2_t, bias2, tm=8, tn=128))
    assert out_tiled.shape == (B, S, I2)
    assert jnp.allclose(out_tiled, _reference(hidden_states, weight2_t, bias2),
                        atol=1e-5, rtol=1e-5)

    # 4) bf16 MXU path (f32 accumulation / epilogue); looser tolerance expected.
    out_bf16 = jax.block_until_ready(
        bert_intermediate(hidden_states, weight_t, bias, compute_dtype=jnp.bfloat16))
    assert jnp.allclose(out_bf16, ref, atol=5e-2, rtol=5e-2)

    # 5) Optional tanh-gelu (EUP) epilogue; close to, but not identical to, exact gelu.
    out_tanh = jax.block_until_ready(
        bert_intermediate(hidden_states, weight_t, bias, use_tanh_gelu=True))
    assert jnp.allclose(out_tanh, ref, atol=1e-2, rtol=1e-2)

    print("KERNEL_OK")
</pallas_src>

<mosaic_0001>
module attributes {stable_mosaic.version = 11 : i64} {
  func.func @_bert_intermediate_kernel(%arg0: i32, %arg1: memref<16x32xf32, #tpu.memory_space<vmem>>, %arg2: memref<32x128xf32, #tpu.memory_space<vmem>>, %arg3: memref<1x128xf32, #tpu.memory_space<vmem>>, %arg4: memref<16x128xf32, #tpu.memory_space<vmem>>) attributes {dimension_semantics = [#tpu.dimension_semantics<parallel>], iteration_bounds = array<i64: 1>, scalar_prefetch = 0 : i64, scratch_operands = 0 : i64, tpu.core_type = #tpu.core_type<tc>, window_params = [{transform_indices = @transform_0, window_bounds = array<i64: 16, 32>}, {pipeline_mode = #tpu.pipeline_mode<synchronous>, transform_indices = @transform_1, window_bounds = array<i64: 32, 128>}, {pipeline_mode = #tpu.pipeline_mode<synchronous>, transform_indices = @transform_2, window_bounds = array<i64: 1, 128>}, {transform_indices = @transform_3, window_bounds = array<i64: 16, 128>}]} {
    %c0 = arith.constant 0 : index
    %c0_0 = arith.constant 0 : index
    %0 = vector.load %arg1[%c0, %c0_0] : memref<16x32xf32, #tpu.memory_space<vmem>>, vector<16x32xf32>
    %c0_1 = arith.constant 0 : index
    %c0_2 = arith.constant 0 : index
    %1 = vector.load %arg2[%c0_1, %c0_2] : memref<32x128xf32, #tpu.memory_space<vmem>>, vector<32x128xf32>
    %cst = arith.constant dense<0.000000e+00> : vector<16x128xf32>
    %2 = tpu.matmul %0, %1, %cst {dimension_numbers = #tpu.dot_dimension_numbers<[1], [0], [0], [1], [0, 0, 1, 1], [], []>} : vector<16x32xf32>, vector<32x128xf32>, vector<16x128xf32> -> vector<16x128xf32>
    %c0_3 = arith.constant 0 : index
    %c0_4 = arith.constant 0 : index
    %3 = vector.load %arg3[%c0_3, %c0_4] : memref<1x128xf32, #tpu.memory_space<vmem>>, vector<1x128xf32>
    %4 = vector.broadcast %3 : vector<1x128xf32> to vector<16x128xf32>
    %5 = arith.addf %2, %4 : vector<16x128xf32>
    %cst_5 = arith.constant 5.000000e-01 : f32
    %6 = vector.broadcast %cst_5 : f32 to vector<16x128xf32>
    %7 = arith.mulf %6, %5 : vector<16x128xf32>
    %cst_6 = arith.constant 0.707106769 : f32
    %8 = vector.broadcast %cst_6 : f32 to vector<16x128xf32>
    %9 = arith.mulf %5, %8 : vector<16x128xf32>
    %10 = math.erf %9 : vector<16x128xf32>
    %cst_7 = arith.constant 1.000000e+00 : f32
    %11 = vector.broadcast %cst_7 : f32 to vector<16x128xf32>
    %12 = arith.addf %11, %10 : vector<16x128xf32>
    %13 = arith.mulf %7, %12 : vector<16x128xf32>
    %c0_8 = arith.constant 0 : index
    %c0_9 = arith.constant 0 : index
    %14 = vector.load %arg4[%c0_8, %c0_9] : memref<16x128xf32, #tpu.memory_space<vmem>>, vector<16x128xf32>
    tpu.vector_store %arg4[%c0_8, %c0_9], %13 {strides = array<i32>} : memref<16x128xf32, #tpu.memory_space<vmem>>, vector<16x128xf32>,
    return
  }
  func.func @transform_0(%arg0: i32) -> (i32, i32) {
    %c0_i32 = arith.constant 0 : i32
    %c0_i32_0 = arith.constant 0 : i32
    return %arg0, %c0_i32 : i32, i32
  }
  func.func @transform_1(%arg0: i32) -> (i32, i32) {
    %c0_i32 = arith.constant 0 : i32
    %c0_i32_0 = arith.constant 0 : i32
    %c0_i32_1 = arith.constant 0 : i32
    return %c0_i32, %c0_i32_0 : i32, i32
  }
  func.func @transform_2(%arg0: i32) -> (i32, i32) {
    %c0_i32 = arith.constant 0 : i32
    %c0_i32_0 = arith.constant 0 : i32
    %c0_i32_1 = arith.constant 0 : i32
    return %c0_i32, %c0_i32_0 : i32, i32
  }
  func.func @transform_3(%arg0: i32) -> (i32, i32) {
    %c0_i32 = arith.constant 0 : i32
    %c0_i32_0 = arith.constant 0 : i32
    return %arg0, %c0_i32 : i32, i32
  }
}

</mosaic_0001>

<llo_original>
// kernel: bert_intermediate.1
$region0: #{bert_intermediate.1}
  #allocation0 [shape = 'u32[]', space=smem, size = 0x4, offset = 0x4, fixed_abs, tag = 'smem constant byte address 0x4 - core index']
  #allocation1 [shape = 'u32[144,128]{1,0:T(1,128)}', space=vmem, size = 0x12000, scoped, tag = 'internal scratch']
  %s0 = inlined_call_operand.hbm [shape: f32[16,32], index: 0, kind: input, shape index: {}]
  %s1 = inlined_call_operand.hbm [shape: f32[32,128], index: 1, kind: input, shape index: {}]
  %s2 = inlined_call_operand.vmem [shape: f32[1,128], index: 2, kind: input, shape index: {}]
  %s3 = inlined_call_operand.hbm [shape: f32[16,128], index: 3, kind: output, shape index: {}]
  %s4 = sld [smem:[#allocation0]]
  $region30: #{bert_intermediate.1} parent=0
    _
  %s6 = ssub.s32 1, %s4
  %s7 = scalar_select 0, %s6, %s4
  $region1: #{bert_intermediate.1} parent=0
    #allocation2 [shape = 'u8[8192]{0}', space=vmem, size = 0x2000, scoped, tag = 'input window, operand 0, single buffered']
    #allocation3 [shape = 's32[1]{0}', space=sflag, size = 0x4, scoped, tag = 'scoped memory for bert_intermediate.1']
    #allocation4 [shape = 's32[1]{0}', space=sflag, size = 0x4, scoped, tag = 'scoped memory for bert_intermediate.1']
    #allocation5 [shape = 'u8[16384]{0}', space=vmem, size = 0x4000, scoped, tag = 'input window, operand 1, single buffered']
    #allocation6 [shape = 's32[1]{0}', space=sflag, size = 0x4, scoped, tag = 'scoped memory for bert_intermediate.1']
    #allocation7 [shape = 'u8[8192]{0}', space=vmem, size = 0x2000, scoped, tag = 'output window, operand 0, single buffered']
    %8 = vsyncpa [#allocation3], 0
    %9 = vsyncpa [#allocation6], 0
    %10 = vsyncpa [#allocation4], 0
    // Predicated region
    $region2: #{bert_intermediate.1} parent=1 // pred_check
      _
    $region3: #{bert_intermediate.1} parent=1 // pred_check_branch
      %12 = sbr.rel (0) target = $region5
    $region4: #{bert_intermediate.1} parent=1 // pred_region
      %s14 = ssub.s32 256, 256
      %15 = vsyncadd [#allocation3], %s14
      %s16 = sshll.u32 [#allocation2], 4
      %s17 = int_to_ptr.vmem [resolvable:$true] %s16
      %22 = dma.hbm_to_vmem [thread:$0]  %s0, 256, %s17, [#allocation3], 128, 128, 8
    $region5: #{bert_intermediate.1} parent=1 // pred_fallthru
      _
    // Predicated region
    $region6: #{bert_intermediate.1} parent=1 // pred_check
      _
    $region7: #{bert_intermediate.1} parent=1 // pred_check_branch
      %24 = sbr.rel (0) target = $region9
    $region8: #{bert_intermediate.1} parent=1 // pred_region
      %s26 = ssub.s32 512, 512
      %27 = vsyncadd [#allocation6], %s26
      %s28 = sshll.u32 [#allocation5], 4
      %s29 = int_to_ptr.vmem [resolvable:$true] %s28
      %34 = dma.hbm_to_vmem [thread:$0]  %s1, 512, %s29, [#allocation6], 128, 128, 8
    $region9: #{bert_intermediate.1} parent=1 // pred_fallthru
      _
    // Predicated region
    $region10: #{bert_intermediate.1} parent=1 // pred_check
      _
    $region11: #{bert_intermediate.1} parent=1 // pred_check_branch
      %36 = sbr.rel (0) target = $region13
    $region12: #{bert_intermediate.1} parent=1 // pred_region
      _
    $region13: #{bert_intermediate.1} parent=1 // pred_fallthru
      _
    // Predicated region
    $region14: #{bert_intermediate.1} parent=1 // pred_check
      _
    $region15: #{bert_intermediate.1} parent=1 // pred_check_branch
      %38 = sbr.rel (0) target = $region17
    $region16: #{bert_intermediate.1} parent=1 // pred_region
      %39 = dma.done [#allocation3], 256
    $region17: #{bert_intermediate.1} parent=1 // pred_fallthru
      _
    // Predicated region
    $region18: #{bert_intermediate.1} parent=1 // pred_check
      _
    $region19: #{bert_intermediate.1} parent=1 // pred_check_branch
      %41 = sbr.rel (0) target = $region21
    $region20: #{bert_intermediate.1} parent=1 // pred_region
      %42 = dma.done [#allocation6], 512
    $region21: #{bert_intermediate.1} parent=1 // pred_fallthru
      _
    %v43 = vld [vmem:[#allocation2] sm:$0xff]
    %v44 = vld [vmem:[#allocation2 + $0x8] sm:$0xff]
    %v45 = vld [vmem:[#allocation5] sm:$0xff]
    %v46 = vld [vmem:[#allocation5 + $0x8] sm:$0xff]
    %v47 = vld [vmem:[#allocation5 + $0x10] sm:$0xff]
    %v48 = vld [vmem:[#allocation5 + $0x18] sm:$0xff]
    %v49 = vld [vmem:[%s2] sm:$0x1]
    %v51 = vlaneseq
    %v52 = vshrl.u32 %v51, 7
    %v53 = vsub.s32 0, %v52
    %v54 = vrot.slane %v49, %v53
    %vm56 = vcmask 261120
    %v58 = vsel %vm56, %v43, 0
    %v61 = vsel %vm56, %v44, 0
    %63 = vmatprep.subr.mxu0 0.0
    %64 = vmatpush1.msra.mxu0 %v45
    %65 = vmatprep.subr.mxu0 0.0
    %66 = vmatpush1.msra.mxu0 %v46
    %67 = vmatprep.subr.mxu0 0.0
    %68 = vmatpush1.msra.mxu0 %v47
    %69 = vmatprep.subr.mxu0 0.0
    %70 = vmatpush1.msra.mxu0 %v48
    %71 = vmatprep.subr.mxu0 0.0
    %72 = vmatpush1.msra.mxu0 0.0
    %73 = vmatprep.subr.mxu0 0.0
    %74 = vmatpush1.msra.mxu0 0.0
    %75 = vmatprep.subr.mxu0 0.0
    %76 = vmatpush1.msra.mxu0 0.0
    %77 = vmatprep.subr.mxu0 0.0
    %78 = vmatpush1.msra.mxu0 0.0
    %79 = vmatprep.subr.mxu0 0.0
    %80 = vmatpush1.msra.mxu0 0.0
    %81 = vmatprep.subr.mxu0 0.0
    %82 = vmatpush1.msra.mxu0 0.0
    %83 = vmatprep.subr.mxu0 0.0
    %84 = vmatpush1.msra.mxu0 0.0
    %85 = vmatprep.subr.mxu0 0.0
    %86 = vmatpush1.msra.mxu0 0.0
    %87 = vmatprep.subr.mxu0 0.0
    %88 = vmatpush1.msra.mxu0 0.0
    %89 = vmatprep.subr.mxu0 0.0
    %90 = vmatpush1.msra.mxu0 0.0
    %91 = vmatprep.subr.mxu0 0.0
    %92 = vmatpush1.msra.mxu0 0.0
    %93 = vmatprep.subr.mxu0 0.0
    %94 = vmatpush1.msra.mxu0 0.0
    %95 = vmatprep.subr.mxu0 0.0
    %96 = vmatpush1.msra.mxu0 0.0
    %97 = vmatprep.subr.mxu0 0.0
    %98 = vmatpush1.msra.mxu0 0.0
    %99 = vmatprep.subr.mxu0 0.0
    %100 = vmatpush1.msra.mxu0 0.0
    %101 = vmatprep.subr.mxu0 0.0
    %102 = vmatpush1.msra.mxu0 0.0
    %103 = vmatprep.subr.mxu0 0.0
    %104 = vmatpush1.msra.mxu0 0.0
    %105 = vmatprep.subr.mxu0 0.0
    %106 = vmatpush1.msra.mxu0 0.0
    %107 = vmatprep.subr.mxu0 0.0
    %108 = vmatpush1.msra.mxu0 0.0
    %109 = vmatprep.subr.mxu0 0.0
    %110 = vmatpush1.msra.mxu0 0.0
    %111 = vmatprep.subr.mxu0 0.0
    %112 = vmatpush1.msra.mxu0 0.0
    %113 = vmatprep.subr.mxu0 0.0
    %114 = vmatpush1.msra.mxu0 0.0
    %115 = vmatprep.subr.mxu0 0.0
    %116 = vmatpush1.msra.mxu0 0.0
    %117 = vmatprep.subr.mxu0 0.0
    %118 = vmatpush1.msra.mxu0 0.0
    %119 = vmatprep.subr.mxu0 0.0
    %120 = vmatpush1.msra.mxu0 0.0
    %121 = vmatprep.subr.mxu0 0.0
    %122 = vmatpush1.msra.mxu0 0.0
    %123 = vmatprep.subr.mxu0 0.0
    %124 = vmatpush1.msra.mxu0 0.0
    %125 = vmatprep.subr.mxu0 0.0
    %126 = vmatpush1.msra.mxu0 0.0
    %127 = vmatprep.mubr.f32.mxu0 0.0
    %128 = vmatmul.mubr.f32.gmra.mrb[0].mxu0 %v58
    %v129 = vpop.f32.mrb[0].mxu0
    %v130 = vadd.f32 %v54, %v129
    %v131 = vpop.f32.mrb[0].mxu0
    %132 = vmatprep.mubr.f32.mxu0 0.0
    %133 = vmatmul.mubr.f32.gmra.mrb[0].mxu0 %v61
    %v134 = vpop.f32.mrb[0].mxu0
    %v135 = vadd.f32 %v54, %v134
    %v136 = vpop.f32.mrb[0].mxu0
    %137 = vdwg.mxu0
    %v138 = vmul.f32 %v130, 0.5
    %v139 = vmul.f32 %v135, 0.5
    %v140 = vmul.f32 %v130, 0.70710677
    %v141 = vmul.f32 %v135, 0.70710677
    %v142 = verf.f32.pop %v140
    %v143 = verf.f32.pop %v141
    %v144 = vadd.f32 %v142, 1.0
    %v145 = vadd.f32 %v143, 1.0
    %v146 = vmul.f32 %v138, %v144
    %v147 = vmul.f32 %v139, %v145
    %148 = vst [vmem:[#allocation7] sm:$0xff] %v146
    %149 = vst [vmem:[#allocation7 + $0x8] sm:$0xff] %v147
    // Predicated region
    $region22: #{bert_intermediate.1} parent=1 // pred_check
      _
    $region23: #{bert_intermediate.1} parent=1 // pred_check_branch
      %151 = sbr.rel (0) target = $region25
    $region24: #{bert_intermediate.1} parent=1 // pred_region
      %s153 = ssub.s32 256, 256
      %154 = vsyncadd [#allocation4], %s153
      %s155 = sshll.u32 [#allocation7], 4
      %s156 = int_to_ptr.vmem [resolvable:$true] %s155
      %161 = dma.vmem_to_hbm [thread:$0]  %s156, 256, %s3, [#allocation4], 128, 128, 8
    $region25: #{bert_intermediate.1} parent=1 // pred_fallthru
      _
    // Predicated region
    $region26: #{bert_intermediate.1} parent=1 // pred_check
      _
    $region27: #{bert_intermediate.1} parent=1 // pred_check_branch
      %163 = sbr.rel (0) target = $region29
    $region28: #{bert_intermediate.1} parent=1 // pred_region
      %164 = dma.done [#allocation4], 256
    $region29: #{bert_intermediate.1} parent=1 // pred_fallthru
      _
    %165 = vsyncpa [#allocation3], 1
    %166 = vsyncpa [#allocation6], 1
    %167 = vsyncpa [#allocation4], 1

</llo_original>
